<compile_context>
chip_gen: v7x
topology: tpu7x:2x2x1
jax: 0.10.0
libtpu: 0.0.40
codegen_flags: <defaults>
</compile_context>

<pallas_src>
import functools

import jax
import jax.numpy as jnp
from jax.experimental import pallas as pl
from jax.experimental.pallas import tpu as pltpu


_MAX_BATCH_TILE = 2048      # rows per grid step; beyond this, per-step overhead is noise
_TARGET_GRID_STEPS = 8      # aim for >= 8 pipelined steps (also feeds v7x megacore)


def _round_up(a, m):
    return (a + m - 1) // m * m


def _vmem_budget():
    """Generation-aware (pipeline_budget_bytes, scoped_vmem_limit_bytes)."""
    try:
        cap = int(pltpu.get_tpu_info().vmem_capacity_bytes)
    except Exception:
        cap = 64 << 20  # assume the smallest generation (v7x: 64 MiB per TC)
    # Leave headroom below physical VMEM for Mosaic internal scratch/temporaries.
    limit = max(32 << 20, min(cap - (16 << 20), 112 << 20))
    return limit - (8 << 20), limit


def _pick_batch_tile(B, per_row_bytes, fixed_bytes, pipeline_budget):
    """Rows per grid step.

    Largest 8-aligned tile that fits the pipelining budget, capped so the batch
    grid has ~_TARGET_GRID_STEPS double-buffered steps when B permits (keeps the
    DMA pipeline streaming and gives v7x's 2 TensorCores work to split).
    """
    avail = max(pipeline_budget - fixed_bytes, per_row_bytes)
    fit = max(1, int(avail // max(per_row_bytes, 1)))
    bb = B if fit >= B else max(8, (fit // 8) * 8)
    target_bb = _round_up(pl.cdiv(B, _TARGET_GRID_STEPS), 8)
    bb = min(bb, target_bb, _MAX_BATCH_TILE)
    return B if bb >= B else bb


def _layernorm_kernel(idx_ref, x_ref, w_ref, b_ref, o_ref, *, eps, n_red):
    # idx_ref (SMEM, scalar prefetch) is consumed by the param BlockSpec index_maps.
    del idx_ref
    x = x_ref[...].astype(jnp.float32)                        # (bb, D)
    inv_n = 1.0 / float(n_red)
    mean = jnp.sum(x, axis=-1, keepdims=True) * inv_n
    xc = x - mean
    # Two-pass variance over the VMEM-resident tile (torch-like numerics).
    var = jnp.sum(xc * xc, axis=-1, keepdims=True) * inv_n
    inv = jax.lax.rsqrt(var + eps)
    w = w_ref[0].astype(jnp.float32)                          # (1, D) broadcast over rows
    b = b_ref[0].astype(jnp.float32)
    o_ref[...] = (xc * inv * w + b).astype(o_ref.dtype)


def layer_norm_pallas(x, weight, bias, idx, eps=1e-5):
    """x: (B, C, L); weight/bias: (C, N, L) (or None = no affine); idx selects along N."""
    B, C, L = x.shape
    D = C * L

    if weight is None:
        # TODO(synk): non-affine path reuses the affine kernel with unit/zero params.
        w_in = jnp.ones((1, 1, D), jnp.float32)
        b_in = jnp.zeros((1, 1, D), jnp.float32)
        idx = 0
    else:
        Cw, N, Lw = weight.shape
        assert (Cw, Lw) == (C, L) and bias.shape == weight.shape
        # (C, N, L) -> (N, 1, C*L): the idx-th param row is a full, lane-dense block
        # that the in-kernel (SMEM-prefetched) idx selects for ANY L.
        w_in = jnp.transpose(weight, (1, 0, 2)).reshape(N, 1, D)
        b_in = jnp.transpose(bias, (1, 0, 2)).reshape(N, 1, D)

    idx_arr = jnp.reshape(jnp.asarray(idx, jnp.int32), (1,))
    x_in = x.reshape(B, D)                                    # contiguous -> free reshape

    # --- VMEM budgeting -----------------------------------------------------
    x_bytes = jnp.dtype(x.dtype).itemsize
    p_bytes = jnp.dtype(w_in.dtype).itemsize
    d_pad = _round_up(D, 128)
    row_io = d_pad * x_bytes
    per_row = 2 * row_io + 2 * row_io                         # double-buffered in + out
    if x_bytes < 4:
        per_row += 2 * d_pad * 4                              # f32 working copies (16/8-bit in)
    fixed = 2 * 2 * 8 * d_pad * p_bytes + 2 * 8 * d_pad * 4   # params (dbl-buf) + f32 casts

    pipeline_budget, vmem_limit = _vmem_budget()
    bb = _pick_batch_tile(B, per_row, fixed, pipeline_budget)
    grid = (pl.cdiv(B, bb),)

    out = pl.pallas_call(
        functools.partial(_layernorm_kernel, eps=eps, n_red=D),
        out_shape=jax.ShapeDtypeStruct((B, D), x.dtype),
        grid_spec=pltpu.PrefetchScalarGridSpec(
            num_scalar_prefetch=1,
            grid=grid,
            in_specs=[
                pl.BlockSpec((bb, D), lambda i, idx_ref: (i, 0)),
                pl.BlockSpec((1, 1, D), lambda i, idx_ref: (idx_ref[0], 0, 0)),
                pl.BlockSpec((1, 1, D), lambda i, idx_ref: (idx_ref[0], 0, 0)),
            ],
            out_specs=pl.BlockSpec((bb, D), lambda i, idx_ref: (i, 0)),
        ),
        compiler_params=pltpu.CompilerParams(
            dimension_semantics=("parallel",),
            vmem_limit_bytes=vmem_limit,
        ),
    )(idx_arr, x_in, w_in, b_in)

    return out.reshape(B, C, L)


def _reference(x, weight, bias, idx, eps):
    B = x.shape[0]
    xf = x.reshape(B, -1).astype(jnp.float32)
    mean = xf.mean(-1, keepdims=True)
    var = ((xf - mean) ** 2).mean(-1, keepdims=True)
    y = ((xf - mean) / jnp.sqrt(var + eps)).reshape(x.shape)
    w = weight[:, idx, :].astype(jnp.float32)[None]
    b = bias[:, idx, :].astype(jnp.float32)[None]
    return y * w + b


if __name__ == "__main__":
    key = jax.random.PRNGKey(0)
    eps = 1e-5
    k1, k2, k3, k4 = jax.random.split(key, 4)

    # Case 1: lane-aligned L, multi-step batch grid (bb=8 -> 2 pipelined steps).
    B, C, N, L = 16, 4, 3, 128
    x = jax.random.normal(k1, (B, C, L), dtype=jnp.float32)
    # reset_parameters() gives ones/zeros; perturb so the affine + idx path is real.
    w = 1.0 + 0.1 * jax.random.normal(k2, (C, N, L), jnp.float32)
    b = 0.1 * jax.random.normal(k3, (C, N, L), jnp.float32)
    out = jax.block_until_ready(layer_norm_pallas(x, w, b, 1, eps=eps))
    ref = _reference(x, w, b, 1, eps)
    assert out.shape == x.shape and out.dtype == x.dtype
    err = float(jnp.max(jnp.abs(out - ref)))
    assert jnp.allclose(out, ref, atol=1e-4, rtol=1e-4), f"case1 max abs err {err}"

    # Case 2: L not a multiple of 128, nonzero mean input — same single code path.
    B2, C2, N2, L2 = 6, 4, 3, 24
    x2 = 3.0 + 2.0 * jax.random.normal(k4, (B2, C2, L2), dtype=jnp.float32)
    w2 = 1.0 + 0.1 * jax.random.normal(k2, (C2, N2, L2), jnp.float32)
    b2 = 0.1 * jax.random.normal(k3, (C2, N2, L2), jnp.float32)
    out2 = jax.block_until_ready(layer_norm_pallas(x2, w2, b2, 2, eps=eps))
    ref2 = _reference(x2, w2, b2, 2, eps)
    err2 = float(jnp.max(jnp.abs(out2 - ref2)))
    assert jnp.allclose(out2, ref2, atol=1e-4, rtol=1e-4), f"case2 max abs err {err2}"

    print("KERNEL_OK")
</pallas_src>

<mosaic_0001>
module attributes {stable_mosaic.version = 11 : i64} {
  func.func @_layernorm_kernel(%arg0: i32, %arg1: memref<1xi32, #tpu.memory_space<smem>>, %arg2: memref<8x512xf32, #tpu.memory_space<vmem>>, %arg3: memref<1x1x512xf32, #tpu.memory_space<vmem>>, %arg4: memref<1x1x512xf32, #tpu.memory_space<vmem>>, %arg5: memref<8x512xf32, #tpu.memory_space<vmem>>) attributes {dimension_semantics = [#tpu.dimension_semantics<parallel>], iteration_bounds = array<i64: 2>, scalar_prefetch = 1 : i64, scratch_operands = 0 : i64, tpu.core_type = #tpu.core_type<tc>, window_params = [{transform_indices = @transform_0, window_bounds = array<i64: 8, 512>}, {transform_indices = @transform_1, window_bounds = array<i64: 1, 1, 512>}, {transform_indices = @transform_2, window_bounds = array<i64: 1, 1, 512>}, {transform_indices = @transform_3, window_bounds = array<i64: 8, 512>}]} {
    %c0 = arith.constant 0 : index
    %c0_0 = arith.constant 0 : index
    %0 = vector.load %arg2[%c0, %c0_0] : memref<8x512xf32, #tpu.memory_space<vmem>>, vector<8x512xf32>
    %cst = arith.constant dense<0.000000e+00> : vector<8xf32>
    %1 = vector.multi_reduction <add>, %0, %cst [1] : vector<8x512xf32> to vector<8xf32>
    %2 = vector.shape_cast %1 : vector<8xf32> to vector<8x1xf32>
    %cst_1 = arith.constant 0.001953125 : f32
    %3 = vector.broadcast %cst_1 : f32 to vector<8x1xf32>
    %4 = arith.mulf %2, %3 : vector<8x1xf32>
    %5 = vector.broadcast %4 : vector<8x1xf32> to vector<8x512xf32>
    %6 = arith.subf %0, %5 : vector<8x512xf32>
    %7 = arith.mulf %6, %6 : vector<8x512xf32>
    %cst_2 = arith.constant dense<0.000000e+00> : vector<8xf32>
    %8 = vector.multi_reduction <add>, %7, %cst_2 [1] : vector<8x512xf32> to vector<8xf32>
    %9 = vector.shape_cast %8 : vector<8xf32> to vector<8x1xf32>
    %cst_3 = arith.constant 0.001953125 : f32
    %10 = vector.broadcast %cst_3 : f32 to vector<8x1xf32>
    %11 = arith.mulf %9, %10 : vector<8x1xf32>
    %cst_4 = arith.constant 9.99999974E-6 : f32
    %12 = vector.broadcast %cst_4 : f32 to vector<8x1xf32>
    %13 = arith.addf %11, %12 : vector<8x1xf32>
    %14 = math.rsqrt %13 : vector<8x1xf32>
    %c0_5 = arith.constant 0 : index
    %c0_6 = arith.constant 0 : index
    %c0_7 = arith.constant 0 : index
    %15 = vector.load %arg3[%c0_5, %c0_6, %c0_7] : memref<1x1x512xf32, #tpu.memory_space<vmem>>, vector<1x1x512xf32>
    %16 = vector.shape_cast %15 : vector<1x1x512xf32> to vector<1x512xf32>
    %c0_8 = arith.constant 0 : index
    %c0_9 = arith.constant 0 : index
    %c0_10 = arith.constant 0 : index
    %17 = vector.load %arg4[%c0_8, %c0_9, %c0_10] : memref<1x1x512xf32, #tpu.memory_space<vmem>>, vector<1x1x512xf32>
    %18 = vector.shape_cast %17 : vector<1x1x512xf32> to vector<1x512xf32>
    %19 = vector.broadcast %14 : vector<8x1xf32> to vector<8x512xf32>
    %20 = arith.mulf %6, %19 : vector<8x512xf32>
    %21 = vector.broadcast %16 : vector<1x512xf32> to vector<8x512xf32>
    %22 = arith.mulf %20, %21 : vector<8x512xf32>
    %23 = vector.broadcast %18 : vector<1x512xf32> to vector<8x512xf32>
    %24 = arith.addf %22, %23 : vector<8x512xf32>
    %c0_11 = arith.constant 0 : index
    %c0_12 = arith.constant 0 : index
    %25 = vector.load %arg5[%c0_11, %c0_12] : memref<8x512xf32, #tpu.memory_space<vmem>>, vector<8x512xf32>
    tpu.vector_store %arg5[%c0_11, %c0_12], %24 {strides = array<i32>} : memref<8x512xf32, #tpu.memory_space<vmem>>, vector<8x512xf32>,
    return
  }
  func.func @transform_0(%arg0: i32, %arg1: memref<1xi32, #tpu.memory_space<smem>>) -> (i32, i32) {
    %c0_i32 = arith.constant 0 : i32
    %c0_i32_0 = arith.constant 0 : i32
    return %arg0, %c0_i32 : i32, i32
  }
  func.func @transform_1(%arg0: i32, %arg1: memref<1xi32, #tpu.memory_space<smem>>) -> (i32, i32, i32) {
    %c0 = arith.constant 0 : index
    %0 = memref.load %arg1[%c0] : memref<1xi32, #tpu.memory_space<smem>>
    %c0_i32 = arith.constant 0 : i32
    %c0_i32_0 = arith.constant 0 : i32
    %c0_i32_1 = arith.constant 0 : i32
    return %0, %c0_i32, %c0_i32_0 : i32, i32, i32
  }
  func.func @transform_2(%arg0: i32, %arg1: memref<1xi32, #tpu.memory_space<smem>>) -> (i32, i32, i32) {
    %c0 = arith.constant 0 : index
    %0 = memref.load %arg1[%c0] : memref<1xi32, #tpu.memory_space<smem>>
    %c0_i32 = arith.constant 0 : i32
    %c0_i32_0 = arith.constant 0 : i32
    %c0_i32_1 = arith.constant 0 : i32
    return %0, %c0_i32, %c0_i32_0 : i32, i32, i32
  }
  func.func @transform_3(%arg0: i32, %arg1: memref<1xi32, #tpu.memory_space<smem>>) -> (i32, i32) {
    %c0_i32 = arith.constant 0 : i32
    %c0_i32_0 = arith.constant 0 : i32
    return %arg0, %c0_i32 : i32, i32
  }
}

</mosaic_0001>

<llo_original>
// kernel: tpu_custom_call.1
$region0: #{tpu_custom_call.1}
  #allocation0 [shape = 'u32[]', space=smem, size = 0x4, offset = 0x4, fixed_abs, tag = 'smem constant byte address 0x4 - core index']
  #allocation1 [shape = 'u32[144,128]{1,0:T(1,128)}', space=vmem, size = 0x12000, scoped, tag = 'internal scratch']
  #allocation2 [shape = 's32[1]{0}', space=sflag, size = 0x4, scoped, tag = 'scoped memory for tpu_custom_call.1']
  #allocation3 [shape = 's32[1]{0:T(128)S(6)}', space=smem, size = 0x200, scoped, tag = 'prefetched SMEM operand 0']
  %s0 = inlined_call_operand.<no memory space> [shape: s32[1], index: 0, kind: input, shape index: {}]
  %s1 = inlined_call_operand.hbm [shape: f32[16,512], index: 1, kind: input, shape index: {}]
  %s2 = inlined_call_operand.hbm [shape: f32[3,1,512], index: 2, kind: input, shape index: {}]
  %s3 = inlined_call_operand.hbm [shape: f32[3,1,512], index: 3, kind: input, shape index: {}]
  %s4 = inlined_call_operand.hbm [shape: f32[16,512], index: 4, kind: output, shape index: {}]
  %s5 = sld [smem:[#allocation0]]
  $region57: #{tpu_custom_call.1} parent=0
    _
  %s7 = ssub.s32 1, %s5
  %s8 = scalar_select 0, %s7, %s5
  %9 = sst [smem:[#allocation3]] %s0
  $region1: #{tpu_custom_call.1} parent=0
    #allocation4 [shape = 'u8[32768]{0}', space=vmem, size = 0x8000, scoped, tag = 'input window, operand 1']
    #allocation5 [shape = 's32[2]{0}', space=sflag, size = 0x8, scoped, tag = 'scoped memory for tpu_custom_call.1']
    #allocation6 [shape = 's32[2]{0}', space=sflag, size = 0x8, scoped, tag = 'scoped memory for tpu_custom_call.1']
    #allocation7 [shape = 'u8[2048]{0}', space=vmem, size = 0x800, scoped, tag = 'input window, operand 2, single buffered']
    #allocation8 [shape = 's32[1]{0}', space=sflag, size = 0x4, scoped, tag = 'scoped memory for tpu_custom_call.1']
    #allocation9 [shape = 'u8[2048]{0}', space=vmem, size = 0x800, scoped, tag = 'input window, operand 3, single buffered']
    #allocation10 [shape = 'u8[32768]{0}', space=vmem, size = 0x8000, scoped, tag = 'output window, operand 0']
    %10 = vsyncpa [#allocation5], 0
    %s11 = scalar_lea.sflag [#allocation5], 1
    %12 = vsyncpa %s11, 0
    %13 = vsyncpa [#allocation8], 0
    %14 = vsyncpa [#allocation6], 0
    %s15 = scalar_lea.sflag [#allocation6], 1
    %16 = vsyncpa %s15, 0
    loop: start=0, step=1, limit=4
    $region2: #{tpu_custom_call.1} parent=1 // loop_pre_header
      _
    $region3: #{tpu_custom_call.1} parent=1 // loop_header
      %s18 = sphi 0, %s22
      %p19 = scmp.ge.s32.totalorder %s18, 4
      %s28 = sphi 0, %s30
      %s31 = sphi 0, %s28
      %s32 = sphi 0, %s31
      %s48 = sphi 0, %s32
      %s56 = sphi 0, %s58
      %s59 = sphi 0, %s56
      %s60 = sphi 0, %s59
      %s76 = sphi 0, %s60
      %s84 = sphi 0, %s86
      %s87 = sphi 0, %s84
      %s88 = sphi 0, %s87
      %s104 = sphi 0, %s88
      %s110 = sphi 0, %s112
      %s113 = sphi 0, %s110
      %s114 = sphi 0, %s113
      %s130 = sphi 0, %s114
    $region4: #{tpu_custom_call.1} parent=1 // loop_header_branch
      %21 = sbr.rel (%p19) target = $region8
    $region5: #{tpu_custom_call.1} parent=1 // loop_body
      %s23 = ssub.s32 %s18, 1
      %s24 = ssub.s32 %s18, 2
      %s25 = sadd.s32 %s18, 1
      %s26 = ssub.s32 %s18, %s25
      %p27 = scmp.eq.s32.totalorder %s26, 0
      %s29 = sadd.s32 %s28, 1
      %s30 = scalar_select %p27, %s28, %s29
      %p33 = pneg %p27
      %p34 = scmp.eq.s32.totalorder %s18, 1
      %p35 = por %p33, %p34
      %p36 = scmp.ne.s32.totalorder %s28, %s31
      %p37 = scmp.eq.s32.totalorder %s18, 0
      %p38 = por %p36, %p37
      %p39 = scmp.ne.s32.totalorder %s28, %s31
      %p40 = scmp.eq.s32.totalorder %s23, 1
      %p41 = por %p39, %p40
      %p42 = scmp.ne.s32.totalorder %s31, %s32
      %p43 = scmp.eq.s32.totalorder %s23, 0
      %p44 = por %p42, %p43
      %p45 = scmp.ne.s32.totalorder %s31, %s32
      %p46 = scmp.eq.s32.totalorder %s24, 1
      %p47 = por %p45, %p46
      %p49 = scmp.ne.s32.totalorder %s32, %s48
      %p50 = scmp.eq.s32.totalorder %s24, 0
      %p51 = por %p49, %p50
      %s52 = sld [smem:[#allocation3]]
      %s53 = sld [smem:[#allocation3]]
      %s54 = ssub.s32 %s52, %s53
      %p55 = scmp.eq.s32.totalorder %s54, 0
      %s57 = sadd.s32 %s56, 1
      %s58 = scalar_select %p55, %s56, %s57
      %p61 = pneg %p55
      %p62 = scmp.eq.s32.totalorder %s18, 1
      %p63 = por %p61, %p62
      %p64 = scmp.ne.s32.totalorder %s56, %s59
      %p65 = scmp.eq.s32.totalorder %s18, 0
      %p66 = por %p64, %p65
      %p67 = scmp.ne.s32.totalorder %s56, %s59
      %p68 = scmp.eq.s32.totalorder %s23, 1
      %p69 = por %p67, %p68
      %p70 = scmp.ne.s32.totalorder %s59, %s60
      %p71 = scmp.eq.s32.totalorder %s23, 0
      %p72 = por %p70, %p71
      %p73 = scmp.ne.s32.totalorder %s59, %s60
      %p74 = scmp.eq.s32.totalorder %s24, 1
      %p75 = por %p73, %p74
      %p77 = scmp.ne.s32.totalorder %s60, %s76
      %p78 = scmp.eq.s32.totalorder %s24, 0
      %p79 = por %p77, %p78
      %s80 = sld [smem:[#allocation3]]
      %s81 = sld [smem:[#allocation3]]
      %s82 = ssub.s32 %s80, %s81
      %p83 = scmp.eq.s32.totalorder %s82, 0
      %s85 = sadd.s32 %s84, 1
      %s86 = scalar_select %p83, %s84, %s85
      %p89 = pneg %p83
      %p90 = scmp.eq.s32.totalorder %s18, 1
      %p91 = por %p89, %p90
      %p92 = scmp.ne.s32.totalorder %s84, %s87
      %p93 = scmp.eq.s32.totalorder %s18, 0
      %p94 = por %p92, %p93
      %p95 = scmp.ne.s32.totalorder %s84, %s87
      %p96 = scmp.eq.s32.totalorder %s23, 1
      %p97 = por %p95, %p96
      %p98 = scmp.ne.s32.totalorder %s87, %s88
      %p99 = scmp.eq.s32.totalorder %s23, 0
      %p100 = por %p98, %p99
      %p101 = scmp.ne.s32.totalorder %s87, %s88
      %p102 = scmp.eq.s32.totalorder %s24, 1
      %p103 = por %p101, %p102
      %p105 = scmp.ne.s32.totalorder %s88, %s104
      %p106 = scmp.eq.s32.totalorder %s24, 0
      %p107 = por %p105, %p106
      %s108 = ssub.s32 %s18, %s25
      %p109 = scmp.eq.s32.totalorder %s108, 0
      %s111 = sadd.s32 %s110, 1
      %s112 = scalar_select %p109, %s110, %s111
      %p115 = pneg %p109
      %p116 = scmp.eq.s32.totalorder %s18, 1
      %p117 = por %p115, %p116
      %p118 = scmp.ne.s32.totalorder %s110, %s113
      %p119 = scmp.eq.s32.totalorder %s18, 0
      %p120 = por %p118, %p119
      %p121 = scmp.ne.s32.totalorder %s110, %s113
      %p122 = scmp.eq.s32.totalorder %s23, 1
      %p123 = por %p121, %p122
      %p124 = scmp.ne.s32.totalorder %s113, %s114
      %p125 = scmp.eq.s32.totalorder %s23, 0
      %p126 = por %p124, %p125
      %p127 = scmp.ne.s32.totalorder %s113, %s114
      %p128 = scmp.eq.s32.totalorder %s24, 1
      %p129 = por %p127, %p128
      %p131 = scmp.ne.s32.totalorder %s114, %s130
      %p132 = scmp.eq.s32.totalorder %s24, 0
      %p133 = por %p131, %p132
      %p134 = scmp.le.s32.totalorder 1, %s18
      %p135 = scmp.lt.s32.totalorder %s18, 3
      %p136 = pnand %p134, %p135
      %p137 = pneg %p136
      // Predicated region
      $region9: #{tpu_custom_call.1} parent=5 // pred_check
        _
      $region10: #{tpu_custom_call.1} parent=5 // pred_check_branch
        %139 = sbr.rel (%p136) target = $region12
      $region11: #{tpu_custom_call.1} parent=5 // pred_region
        %s140 = ssub.s32 %s18, 1
        // Predicated region
        $region13: #{tpu_custom_call.1} parent=11 // pred_check
          %p141 = pneg %p72
        $region14: #{tpu_custom_call.1} parent=11 // pred_check_branch
          %143 = sbr.rel (%p141) target = $region16
        $region15: #{tpu_custom_call.1} parent=11 // pred_region
          %s144 = sld [smem:[#allocation3]]
          %s146 = ssub.s32 64, 64
          %147 = vsyncadd [#allocation8], %s146
          %s148 = smul.addr %s144, 4
          %s149 = smul.addr %s148, 16
          %s150 = scalar_lea.hbm %s2, %s149
          %s152 = sshll.u32 [#allocation7], 4
          %s153 = int_to_ptr.vmem [resolvable:$true] %s152
          %155 = dma.hbm_to_vmem [thread:$0]  %s150, 64, %s153, [#allocation8]
        $region16: #{tpu_custom_call.1} parent=11 // pred_fallthru
          _
        // Predicated region
        $region17: #{tpu_custom_call.1} parent=11 // pred_check
          %p156 = pneg %p100
        $region18: #{tpu_custom_call.1} parent=11 // pred_check_branch
          %158 = sbr.rel (%p156) target = $region20
        $region19: #{tpu_custom_call.1} parent=11 // pred_region
          %s159 = sld [smem:[#allocation3]]
          %s161 = ssub.s32 64, 64
          %162 = vsyncadd [#allocation8], %s161
          %s163 = smul.addr %s159, 4
          %s164 = smul.addr %s163, 16
          %s165 = scalar_lea.hbm %s3, %s164
          %s167 = sshll.u32 [#allocation9], 4
          %s168 = int_to_ptr.vmem [resolvable:$true] %s167
          %170 = dma.hbm_to_vmem [thread:$0]  %s165, 64, %s168, [#allocation8]
        $region20: #{tpu_custom_call.1} parent=11 // pred_fallthru
          _
      $region12: #{tpu_custom_call.1} parent=5 // pred_fallthru
        _
      %p171 = scmp.lt.s32.totalorder %s18, 2
      // Predicated region
      $region21: #{tpu_custom_call.1} parent=5 // pred_check
        %p172 = pneg %p171
      $region22: #{tpu_custom_call.1} parent=5 // pred_check_branch
        %174 = sbr.rel (%p172) target = $region24
      $region23: #{tpu_custom_call.1} parent=5 // pred_region
        // Predicated region
        $region25: #{tpu_custom_call.1} parent=23 // pred_check
          %p175 = pneg %p38
        $region26: #{tpu_custom_call.1} parent=23 // pred_check_branch
          %177 = sbr.rel (%p175) target = $region28
        $region27: #{tpu_custom_call.1} parent=23 // pred_region
          %s178 = sand.u32 %s28, 1
          %s179 = scalar_lea.sflag [#allocation5], %s178
          %s180 = sand.u32 %s28, 1
          %s181 = smul.addr %s180, 32
          %s182 = scalar_lea.vmem [#allocation4], %s181
          %s184 = ssub.s32 512, 512
          %185 = vsyncadd %s179, %s184
          %s186 = smul.addr %s18, 4
          %s187 = smul.addr %s186, 128
          %s188 = scalar_lea.hbm %s1, %s187
          %s190 = sshll.u32 %s182, 4
          %s191 = int_to_ptr.vmem [resolvable:$true] %s190
          %193 = dma.hbm_to_vmem [thread:$0]  %s188, 512, %s191, %s179
        $region28: #{tpu_custom_call.1} parent=23 // pred_fallthru
          _
      $region24: #{tpu_custom_call.1} parent=5 // pred_fallthru
        _
      %p194 = scmp.le.s32.totalorder 1, %s18
      %p195 = scmp.lt.s32.totalorder %s18, 3
      %p196 = pnand %p194, %p195
      %p197 = pneg %p196
      // Predicated region
      $region29: #{tpu_custom_call.1} parent=5 // pred_check
        _
      $region30: #{tpu_custom_call.1} parent=5 // pred_check_branch
        %199 = sbr.rel (%p196) target = $region32
      $region31: #{tpu_custom_call.1} parent=5 // pred_region
        %s200 = ssub.s32 %s18, 1
        %s201 = sand.u32 %s31, 1
        %s202 = scalar_lea.sflag [#allocation5], %s201
        %s203 = sand.u32 %s31, 1
        %s204 = smul.addr %s203, 32
        %s205 = scalar_lea.vmem [#allocation4], %s204
        // Predicated region
        $region33: #{tpu_custom_call.1} parent=31 // pred_check
          %p206 = pneg %p44
        $region34: #{tpu_custom_call.1} parent=31 // pred_check_branch
          %208 = sbr.rel (%p206) target = $region36
        $region35: #{tpu_custom_call.1} parent=31 // pred_region
          %209 = dma.done %s202, 512
        $region36: #{tpu_custom_call.1} parent=31 // pred_fallthru
          _
        // Predicated region
        $region37: #{tpu_custom_call.1} parent=31 // pred_check
          %p210 = pneg %p72
        $region38: #{tpu_custom_call.1} parent=31 // pred_check_branch
          %212 = sbr.rel (%p210) target = $region40
        $region39: #{tpu_custom_call.1} parent=31 // pred_region
          %213 = dma.done [#allocation8], 64
        $region40: #{tpu_custom_call.1} parent=31 // pred_fallthru
          _
        // Predicated region
        $region41: #{tpu_custom_call.1} parent=31 // pred_check
          %p214 = pneg %p100
        $region42: #{tpu_custom_call.1} parent=31 // pred_check_branch
          %216 = sbr.rel (%p214) target = $region44
        $region43: #{tpu_custom_call.1} parent=31 // pred_region
          %217 = dma.done [#allocation8], 64
        $region44: #{tpu_custom_call.1} parent=31 // pred_fallthru
          _
        %s218 = sand.u32 %s31, 1
        %s219 = scalar_lea.sflag [#allocation5], %s218
        %s220 = sand.u32 %s31, 1
        %s221 = smul.addr %s220, 32
        %s222 = scalar_lea.vmem [#allocation4], %s221
        %p223 = pneg %p44
        %p224 = pneg %p41
        %p225 = pneg %p72
        %p226 = pneg %p69
        %p227 = pneg %p100
        %p228 = pneg %p97
        %p229 = pneg %p126
        %p230 = pneg %p123
        %s231 = sand.u32 %s113, 1
        %s232 = scalar_lea.sflag [#allocation6], %s231
        %s233 = sand.u32 %s113, 1
        %s234 = smul.addr %s233, 32
        %s235 = scalar_lea.vmem [#allocation10], %s234
        %s236 = sld [smem:[#allocation3]]
        %s237 = sld [smem:[#allocation3]]
        %v238 = vld [vmem:[%s205] sm:$0xff]
        %v239 = vld [vmem:[%s205 + $0x8] sm:$0xff]
        %v240 = vld [vmem:[%s205 + $0x10] sm:$0xff]
        %v241 = vld [vmem:[%s205 + $0x18] sm:$0xff]
        %v242 = vadd.f32 %v238, %v239
        %v243 = vadd.f32 %v242, %v240
        %v244 = vadd.f32 %v243, %v241
        %245 = vadd.xlane.f32.xlu0 %v244
        %v246 = vpop.xlane.xlu0 %245
        %v247 = vmul.f32 %v246, 0.001953125
        %v248 = vsub.f32 %v238, %v247
        %v249 = vsub.f32 %v239, %v247
        %v250 = vsub.f32 %v240, %v247
        %v251 = vsub.f32 %v241, %v247
        %v252 = vmul.f32 %v248, %v248
        %v253 = vmul.f32 %v249, %v249
        %v254 = vmul.f32 %v250, %v250
        %v255 = vmul.f32 %v251, %v251
        %v256 = vadd.f32 %v252, %v253
        %v257 = vadd.f32 %v256, %v254
        %v258 = vadd.f32 %v257, %v255
        %259 = vadd.xlane.f32.xlu0 %v258
        %v260 = vpop.xlane.xlu0 %259
        %v261 = vmul.f32 %v260, 0.001953125
        %v262 = vadd.f32 %v261, 1e-05
        %v263 = vrsqrt.pop %v262
        %v264 = vld [vmem:[#allocation7] sm:$0xf]
        %v265 = vld [vmem:[#allocation9] sm:$0xf]
        %v266 = vmul.f32 %v248, %v263
        %v267 = vmul.f32 %v249, %v263
        %v268 = vmul.f32 %v250, %v263
        %v269 = vmul.f32 %v251, %v263
        %v271 = vlaneseq
        %v272 = vshrl.u32 %v271, 7
        %v273 = vsub.s32 0, %v272
        %v274 = vrot.slane %v264, %v273
        %v275 = vlaneseq
        %v276 = vshrl.u32 %v275, 7
        %v277 = vsub.s32 1, %v276
        %v278 = vrot.slane %v264, %v277
        %v279 = vlaneseq
        %v280 = vshrl.u32 %v279, 7
        %v281 = vsub.s32 2, %v280
        %v282 = vrot.slane %v264, %v281
        %v283 = vlaneseq
        %v284 = vshrl.u32 %v283, 7
        %v285 = vsub.s32 3, %v284
        %v286 = vrot.slane %v264, %v285
        %v291 = vmul.f32 %v266, %v274
        %v292 = vmul.f32 %v267, %v278
        %v293 = vmul.f32 %v268, %v282
        %v294 = vmul.f32 %v269, %v286
        %v296 = vlaneseq
        %v297 = vshrl.u32 %v296, 7
        %v298 = vsub.s32 0, %v297
        %v299 = vrot.slane %v265, %v298
        %v300 = vlaneseq
        %v301 = vshrl.u32 %v300, 7
        %v302 = vsub.s32 1, %v301
        %v303 = vrot.slane %v265, %v302
        %v304 = vlaneseq
        %v305 = vshrl.u32 %v304, 7
        %v306 = vsub.s32 2, %v305
        %v307 = vrot.slane %v265, %v306
        %v308 = vlaneseq
        %v309 = vshrl.u32 %v308, 7
        %v310 = vsub.s32 3, %v309
        %v311 = vrot.slane %v265, %v310
        %v316 = vadd.f32 %v291, %v299
        %v317 = vadd.f32 %v292, %v303
        %v318 = vadd.f32 %v293, %v307
        %v319 = vadd.f32 %v294, %v311
        %320 = vst [vmem:[%s235] sm:$0xff] %v316
        %321 = vst [vmem:[%s235 + $0x8] sm:$0xff] %v317
        %322 = vst [vmem:[%s235 + $0x10] sm:$0xff] %v318
        %323 = vst [vmem:[%s235 + $0x18] sm:$0xff] %v319
        %s324 = sand.u32 %s113, 1
        %s325 = scalar_lea.sflag [#allocation6], %s324
        %s326 = sand.u32 %s113, 1
        %s327 = smul.addr %s326, 32
        %s328 = scalar_lea.vmem [#allocation10], %s327
        // Predicated region
        $region45: #{tpu_custom_call.1} parent=31 // pred_check
          %p329 = pneg %p123
        $region46: #{tpu_custom_call.1} parent=31 // pred_check_branch
          %331 = sbr.rel (%p329) target = $region48
        $region47: #{tpu_custom_call.1} parent=31 // pred_region
          %s333 = ssub.s32 512, 512
          %334 = vsyncadd %s325, %s333
          %s335 = smul.addr %s23, 4
          %s336 = smul.addr %s335, 128
          %s337 = scalar_lea.hbm %s4, %s336
          %s339 = sshll.u32 %s328, 4
          %s340 = int_to_ptr.vmem [resolvable:$true] %s339
          %342 = dma.vmem_to_hbm [thread:$0]  %s340, 512, %s337, %s325
        $region48: #{tpu_custom_call.1} parent=31 // pred_fallthru
          _
      $region32: #{tpu_custom_call.1} parent=5 // pred_fallthru
        _
      %p343 = scmp.le.s32.totalorder 2, %s18
      // Predicated region
      $region49: #{tpu_custom_call.1} parent=5 // pred_check
        %p344 = pneg %p343
      $region50: #{tpu_custom_call.1} parent=5 // pred_check_branch
        %346 = sbr.rel (%p344) target = $region52
      $region51: #{tpu_custom_call.1} parent=5 // pred_region
        %s347 = ssub.s32 %s18, 2
        // Predicated region
        $region53: #{tpu_custom_call.1} parent=51 // pred_check
          %p348 = pneg %p129
        $region54: #{tpu_custom_call.1} parent=51 // pred_check_branch
          %350 = sbr.rel (%p348) target = $region56
        $region55: #{tpu_custom_call.1} parent=51 // pred_region
          %s351 = sand.u32 %s114, 1
          %s352 = scalar_lea.sflag [#allocation6], %s351
          %s353 = sand.u32 %s114, 1
          %s354 = smul.addr %s353, 32
          %s355 = scalar_lea.vmem [#allocation10], %s354
          %356 = dma.done %s352, 512
        $region56: #{tpu_custom_call.1} parent=51 // pred_fallthru
          _
      $region52: #{tpu_custom_call.1} parent=5 // pred_fallthru
        _
    $region6: #{tpu_custom_call.1} parent=1 // loop_footer
      %s22 = sadd.s32 1, %s18
    $region7: #{tpu_custom_call.1} parent=1 // loop_footer_branch
      %17 = sbr.rel target = $region3
    $region8: #{tpu_custom_call.1} parent=1 // loop_exit
      _
    %357 = vsyncpa [#allocation5], 1
    %s358 = scalar_lea.sflag [#allocation5], 1
    %359 = vsyncpa %s358, 1
    %360 = vsyncpa [#allocation8], 1
    %361 = vsyncpa [#allocation6], 1
    %s362 = scalar_lea.sflag [#allocation6], 1
    %363 = vsyncpa %s362, 1

</llo_original>
